<compile_context>
chip_gen: v7x
topology: tpu7x:2x2x1
jax: 0.10.0
libtpu: 0.0.40
codegen_flags: <defaults>
</compile_context>

<pallas_src>
import functools
import math

import jax
import jax.numpy as jnp
from jax.experimental import pallas as pl
from jax.experimental.pallas import tpu as pltpu

_BASE = 256    # row/col tile quantum: multiple of (8,128) tiling and of the
               # 128-wide (v5e) / 256-wide (v6e/v7x) MXUs.
_LANES = 128


def _round_up(x, m):
    return (x + m - 1) // m * m


def _largest_tile(n, desired, quantum=_BASE):
    """Largest multiple of `quantum` dividing n that is <= desired (n % quantum == 0)."""
    t = min(desired, n)
    t -= t % quantum
    while t > quantum:
        if n % t == 0:
            return t
        t -= quantum
    return quantum


def _vmem_budget_bytes():
    try:
        cap = int(pltpu.get_tpu_info().vmem_capacity_bytes)
    except Exception:
        cap = 64 * 1024 * 1024                     # assume smallest (v7x per-TC)
    # Leave headroom below physical VMEM for compiler-internal scratch.
    return max(32 * 1024 * 1024, min(cap - 16 * 1024 * 1024, 100 * 1024 * 1024))


def _pad_to(a, shape):
    pads = tuple((0, t - s) for s, t in zip(a.shape, shape))
    if any(hi for _, hi in pads):
        return jnp.pad(a, pads)
    return a


# --------------------------------------------------------------------------
# support = x @ W   (hoisted, row-parallel, large row tiles)
# --------------------------------------------------------------------------
def _support_kernel(x_ref, w_ref, o_ref):
    o_ref[...] = jnp.dot(
        x_ref[...], w_ref[...], preferred_element_type=jnp.float32
    ).astype(o_ref.dtype)


def _compute_support(x, weight, *, out_dtype):
    n, f_in = x.shape
    f_out = weight.shape[1]
    tm = _largest_tile(n, 2048)
    return pl.pallas_call(
        _support_kernel,
        out_shape=jax.ShapeDtypeStruct((n, f_out), out_dtype),
        grid_spec=pltpu.PrefetchScalarGridSpec(
            num_scalar_prefetch=0,
            grid=(n // tm,),
            in_specs=[
                pl.BlockSpec((tm, f_in), lambda i: (i, 0)),     # x row-tile
                pl.BlockSpec((f_in, f_out), lambda i: (0, 0)),  # weight (full)
            ],
            out_specs=pl.BlockSpec((tm, f_out), lambda i: (i, 0)),
        ),
        compiler_params=pltpu.CompilerParams(
            dimension_semantics=("parallel",),
        ),
        cost_estimate=pl.CostEstimate(
            flops=2 * n * f_in * f_out,
            transcendentals=0,
            bytes_accessed=(n * f_in * x.dtype.itemsize
                            + f_in * f_out * weight.dtype.itemsize
                            + n * f_out * jnp.dtype(out_dtype).itemsize),
        ),
    )(x, weight)


# --------------------------------------------------------------------------
# output = adj @ support + bias   (K-tiled, f32 accumulator)
# --------------------------------------------------------------------------
def _adj_matmul_bias_kernel(adj_ref, s_ref, b_ref, o_ref, acc_ref, *,
                            tk, resident_support):
    k = pl.program_id(1)

    @pl.when(k == 0)
    def _():
        acc_ref[...] = jnp.zeros_like(acc_ref)

    if resident_support:
        start = pl.multiple_of(k * tk, tk)
        s_blk = s_ref[pl.ds(start, tk), :]
    else:
        s_blk = s_ref[...]

    # adj streamed in its native dtype; cast in-register for the MXU.
    acc_ref[...] += jnp.dot(
        adj_ref[...].astype(s_blk.dtype), s_blk,
        preferred_element_type=jnp.float32)

    @pl.when(k == pl.num_programs(1) - 1)
    def _():
        o_ref[...] = (acc_ref[...] + b_ref[...].astype(jnp.float32)).astype(
            o_ref.dtype)


def graph_convolution(x, adj, weight, bias=None, *, matmul_dtype=jnp.bfloat16):
    """GCN layer forward: adj @ (x @ weight) + bias."""
    x = jnp.asarray(x)
    adj = jnp.asarray(adj)
    weight = jnp.asarray(weight)

    n, f_in = x.shape
    f_out = weight.shape[1]
    assert adj.shape == (n, n)
    out_dtype = x.dtype

    # ---- pad to tile-friendly shapes (lane-dense output stores) -----------
    n_p = _round_up(n, _BASE)
    f_out_p = _round_up(f_out, _LANES)
    x_p = _pad_to(x, (n_p, f_in))
    adj_p = _pad_to(adj, (n_p, n_p))
    w_p = _pad_to(weight, (f_in, f_out_p))
    if bias is None:
        bias2d = jnp.zeros((1, f_out_p), jnp.float32)
    else:
        bias2d = _pad_to(jnp.asarray(bias, jnp.float32).reshape(1, f_out),
                         (1, f_out_p))

    # ---- hoisted first matmul ----------------------------------------------
    support = _compute_support(x_p, w_p, out_dtype=matmul_dtype)

    # ---- tile planning against a generation-aware VMEM budget --------------
    budget = _vmem_budget_bytes()
    adj_bytes = adj_p.dtype.itemsize
    sup_bytes = jnp.dtype(matmul_dtype).itemsize
    out_bytes = jnp.dtype(out_dtype).itemsize

    tm = _largest_tile(n_p, 512)
    if n_p // tm < 2 and n_p >= 2 * _BASE:
        tm = _largest_tile(n_p, n_p // 2)     # keep >=2 row tiles for megacore
    tk = _largest_tile(n_p, 2048)

    def vmem_usage(tm_, tk_, resident_):
        adj_t = 2 * tm_ * tk_ * adj_bytes                       # double-buffered
        sup_t = 2 * (n_p if resident_ else tk_) * f_out_p * sup_bytes
        acc_t = tm_ * f_out_p * 4
        out_t = 2 * tm_ * f_out_p * out_bytes
        return adj_t + sup_t + acc_t + out_t + 2 * f_out_p * 4

    resident = vmem_usage(tm, tk, True) <= budget
    while vmem_usage(tm, tk, resident) > budget and tk > _BASE:
        tk = _largest_tile(n_p, max(_BASE, tk // 2))
    while vmem_usage(tm, tk, resident) > budget and tm > _BASE:
        tm = _largest_tile(n_p, max(_BASE, tm // 2))

    if resident:
        support_spec = pl.BlockSpec((n_p, f_out_p), lambda i, k: (0, 0))
        support_reads = 1
    else:
        support_spec = pl.BlockSpec((tk, f_out_p), lambda i, k: (k, 0))
        support_reads = n_p // tm            # HBM re-read factor of support

    cost = pl.CostEstimate(
        flops=2 * n_p * n_p * f_out_p,
        transcendentals=0,
        bytes_accessed=(n_p * n_p * adj_bytes
                        + support_reads * n_p * f_out_p * sup_bytes
                        + n_p * f_out_p * out_bytes
                        + f_out_p * 4),
    )

    kernel = functools.partial(_adj_matmul_bias_kernel, tk=tk,
                               resident_support=resident)

    out_p = pl.pallas_call(
        kernel,
        out_shape=jax.ShapeDtypeStruct((n_p, f_out_p), out_dtype),
        grid_spec=pltpu.PrefetchScalarGridSpec(
            num_scalar_prefetch=0,
            grid=(n_p // tm, n_p // tk),
            in_specs=[
                pl.BlockSpec((tm, tk), lambda i, k: (i, k)),     # adj tile (native dtype)
                support_spec,                                    # support (resident or K-tiled)
                pl.BlockSpec((1, f_out_p), lambda i, k: (0, 0)),  # bias (tiny)
            ],
            out_specs=pl.BlockSpec((tm, f_out_p), lambda i, k: (i, 0)),
            scratch_shapes=[pltpu.VMEM((tm, f_out_p), jnp.float32)],
        ),
        compiler_params=pltpu.CompilerParams(
            # row-tile axis parallel (v7x megacore), contraction axis arbitrary
            dimension_semantics=("parallel", "arbitrary"),
            vmem_limit_bytes=budget,
        ),
        cost_estimate=cost,
    )(adj_p, support, bias2d)

    if n_p != n or f_out_p != f_out:
        out_p = out_p[:n, :f_out]
    return out_p


if __name__ == "__main__":
    # Small, TPU-friendly shapes: N nodes x F_in features -> F_out features.
    # N=512 exercises both the parallel row axis (grid rows = 2) and the
    # accumulator init/finalize path.
    N, F_IN, F_OUT = 512, 64, 128

    key = jax.random.PRNGKey(0)
    kx, kadj, kw, kb = jax.random.split(key, 4)

    # Deterministic parameter init mirroring reset_parameters():
    # uniform(-stdv, stdv) with stdv = 1/sqrt(out_features).
    stdv = 1.0 / math.sqrt(F_OUT)
    weight = jax.random.uniform(kw, (F_IN, F_OUT), jnp.float32, -stdv, stdv)
    bias = jax.random.uniform(kb, (F_OUT,), jnp.float32, -stdv, stdv)

    x = jax.random.normal(kx, (N, F_IN), jnp.float32)
    # Dense (row-normalized-ish) adjacency.
    adj = jax.random.uniform(kadj, (N, N), jnp.float32) / N

    out = graph_convolution(x, adj, weight, bias)
    out = jax.block_until_ready(out)

    # Reference check (plain JAX, f32 end-to-end). The kernel runs the MXU in
    # bf16 with f32 accumulation, so use a correspondingly loose tolerance.
    ref = adj @ (x @ weight) + bias
    assert out.shape == (N, F_OUT)
    assert out.dtype == x.dtype
    assert jnp.allclose(out, ref, atol=1e-2, rtol=2e-2), float(
        jnp.max(jnp.abs(out - ref)))

    print("KERNEL_OK")
</pallas_src>

<mosaic_0001>
module attributes {stable_mosaic.version = 11 : i64} {
  func.func @_support_kernel(%arg0: i32, %arg1: memref<512x64xf32, #tpu.memory_space<vmem>>, %arg2: memref<64x128xf32, #tpu.memory_space<vmem>>, %arg3: memref<512x128xbf16, #tpu.memory_space<vmem>>) attributes {dimension_semantics = [#tpu.dimension_semantics<parallel>], iteration_bounds = array<i64: 1>, scalar_prefetch = 0 : i64, scratch_operands = 0 : i64, tpu.core_type = #tpu.core_type<tc>, window_params = [{transform_indices = @transform_0, window_bounds = array<i64: 512, 64>}, {pipeline_mode = #tpu.pipeline_mode<synchronous>, transform_indices = @transform_1, window_bounds = array<i64: 64, 128>}, {transform_indices = @transform_2, window_bounds = array<i64: 512, 128>}]} {
    %c0 = arith.constant 0 : index
    %c0_0 = arith.constant 0 : index
    %0 = vector.load %arg1[%c0, %c0_0] : memref<512x64xf32, #tpu.memory_space<vmem>>, vector<512x64xf32>
    %c0_1 = arith.constant 0 : index
    %c0_2 = arith.constant 0 : index
    %1 = vector.load %arg2[%c0_1, %c0_2] : memref<64x128xf32, #tpu.memory_space<vmem>>, vector<64x128xf32>
    %cst = arith.constant dense<0.000000e+00> : vector<512x128xf32>
    %2 = tpu.matmul %0, %1, %cst {dimension_numbers = #tpu.dot_dimension_numbers<[1], [0], [0], [1], [0, 0, 1, 1], [], []>} : vector<512x64xf32>, vector<64x128xf32>, vector<512x128xf32> -> vector<512x128xf32>
    %3 = arith.truncf %2 : vector<512x128xf32> to vector<512x128xbf16>
    %c0_3 = arith.constant 0 : index
    %c0_4 = arith.constant 0 : index
    %4 = vector.load %arg3[%c0_3, %c0_4] : memref<512x128xbf16, #tpu.memory_space<vmem>>, vector<512x128xbf16>
    tpu.vector_store %arg3[%c0_3, %c0_4], %3 {strides = array<i32>} : memref<512x128xbf16, #tpu.memory_space<vmem>>, vector<512x128xbf16>,
    return
  }
  func.func @transform_0(%arg0: i32) -> (i32, i32) {
    %c0_i32 = arith.constant 0 : i32
    %c0_i32_0 = arith.constant 0 : i32
    return %arg0, %c0_i32 : i32, i32
  }
  func.func @transform_1(%arg0: i32) -> (i32, i32) {
    %c0_i32 = arith.constant 0 : i32
    %c0_i32_0 = arith.constant 0 : i32
    %c0_i32_1 = arith.constant 0 : i32
    return %c0_i32, %c0_i32_0 : i32, i32
  }
  func.func @transform_2(%arg0: i32) -> (i32, i32) {
    %c0_i32 = arith.constant 0 : i32
    %c0_i32_0 = arith.constant 0 : i32
    return %arg0, %c0_i32 : i32, i32
  }
}

</mosaic_0001>

<llo_original>
// kernel: tpu_custom_call.1
$region0: #{tpu_custom_call.1}
  #allocation0 [shape = 'u32[]', space=smem, size = 0x4, offset = 0x4, fixed_abs, tag = 'smem constant byte address 0x4 - core index']
  #allocation1 [shape = 'u32[144,128]{1,0:T(1,128)}', space=vmem, size = 0x12000, scoped, tag = 'internal scratch']
  %s0 = inlined_call_operand.vmem [shape: f32[512,64], index: 0, kind: input, shape index: {}]
  %s1 = inlined_call_operand.vmem [shape: f32[64,128], index: 1, kind: input, shape index: {}]
  %s2 = inlined_call_operand.hbm [shape: bf16[512,128], index: 2, kind: output, shape index: {}]
  %s3 = sld [smem:[#allocation0]]
  $region18: #{tpu_custom_call.1} parent=0
    _
  %s5 = ssub.s32 1, %s3
  %s6 = scalar_select 0, %s5, %s3
  $region1: #{tpu_custom_call.1} parent=0
    #allocation2 [shape = 'u8[131072]{0}', space=vmem, size = 0x20000, scoped, tag = 'output window, operand 0, single buffered']
    #allocation3 [shape = 's32[1]{0}', space=sflag, size = 0x4, scoped, tag = 'scoped memory for tpu_custom_call.1']
    %7 = vsyncpa [#allocation3], 0
    // Predicated region
    $region2: #{tpu_custom_call.1} parent=1 // pred_check
      _
    $region3: #{tpu_custom_call.1} parent=1 // pred_check_branch
      %9 = sbr.rel (0) target = $region5
    $region4: #{tpu_custom_call.1} parent=1 // pred_region
      _
    $region5: #{tpu_custom_call.1} parent=1 // pred_fallthru
      _
    // Predicated region
    $region6: #{tpu_custom_call.1} parent=1 // pred_check
      _
    $region7: #{tpu_custom_call.1} parent=1 // pred_check_branch
      %11 = sbr.rel (0) target = $region9
    $region8: #{tpu_custom_call.1} parent=1 // pred_region
      _
    $region9: #{tpu_custom_call.1} parent=1 // pred_fallthru
      _
    %v12 = vld [vmem:[%s0] sm:$0xff]
    %v13 = vld [vmem:[%s0 + $0x8] sm:$0xff]
    %v14 = vld [vmem:[%s0 + $0x10] sm:$0xff]
    %v15 = vld [vmem:[%s0 + $0x18] sm:$0xff]
    %v16 = vld [vmem:[%s0 + $0x20] sm:$0xff]
    %v17 = vld [vmem:[%s0 + $0x28] sm:$0xff]
    %v18 = vld [vmem:[%s0 + $0x30] sm:$0xff]
    %v19 = vld [vmem:[%s0 + $0x38] sm:$0xff]
    %v20 = vld [vmem:[%s0 + $0x40] sm:$0xff]
    %v21 = vld [vmem:[%s0 + $0x48] sm:$0xff]
    %v22 = vld [vmem:[%s0 + $0x50] sm:$0xff]
    %v23 = vld [vmem:[%s0 + $0x58] sm:$0xff]
    %v24 = vld [vmem:[%s0 + $0x60] sm:$0xff]
    %v25 = vld [vmem:[%s0 + $0x68] sm:$0xff]
    %v26 = vld [vmem:[%s0 + $0x70] sm:$0xff]
    %v27 = vld [vmem:[%s0 + $0x78] sm:$0xff]
    %v28 = vld [vmem:[%s0 + $0x80] sm:$0xff]
    %v29 = vld [vmem:[%s0 + $0x88] sm:$0xff]
    %v30 = vld [vmem:[%s0 + $0x90] sm:$0xff]
    %v31 = vld [vmem:[%s0 + $0x98] sm:$0xff]
    %v32 = vld [vmem:[%s0 + $0xa0] sm:$0xff]
    %v33 = vld [vmem:[%s0 + $0xa8] sm:$0xff]
    %v34 = vld [vmem:[%s0 + $0xb0] sm:$0xff]
    %v35 = vld [vmem:[%s0 + $0xb8] sm:$0xff]
    %v36 = vld [vmem:[%s0 + $0xc0] sm:$0xff]
    %v37 = vld [vmem:[%s0 + $0xc8] sm:$0xff]
    %v38 = vld [vmem:[%s0 + $0xd0] sm:$0xff]
    %v39 = vld [vmem:[%s0 + $0xd8] sm:$0xff]
    %v40 = vld [vmem:[%s0 + $0xe0] sm:$0xff]
    %v41 = vld [vmem:[%s0 + $0xe8] sm:$0xff]
    %v42 = vld [vmem:[%s0 + $0xf0] sm:$0xff]
    %v43 = vld [vmem:[%s0 + $0xf8] sm:$0xff]
    %v44 = vld [vmem:[%s0 + $0x100] sm:$0xff]
    %v45 = vld [vmem:[%s0 + $0x108] sm:$0xff]
    %v46 = vld [vmem:[%s0 + $0x110] sm:$0xff]
    %v47 = vld [vmem:[%s0 + $0x118] sm:$0xff]
    %v48 = vld [vmem:[%s0 + $0x120] sm:$0xff]
    %v49 = vld [vmem:[%s0 + $0x128] sm:$0xff]
    %v50 = vld [vmem:[%s0 + $0x130] sm:$0xff]
    %v51 = vld [vmem:[%s0 + $0x138] sm:$0xff]
    %v52 = vld [vmem:[%s0 + $0x140] sm:$0xff]
    %v53 = vld [vmem:[%s0 + $0x148] sm:$0xff]
    %v54 = vld [vmem:[%s0 + $0x150] sm:$0xff]
    %v55 = vld [vmem:[%s0 + $0x158] sm:$0xff]
    %v56 = vld [vmem:[%s0 + $0x160] sm:$0xff]
    %v57 = vld [vmem:[%s0 + $0x168] sm:$0xff]
    %v58 = vld [vmem:[%s0 + $0x170] sm:$0xff]
    %v59 = vld [vmem:[%s0 + $0x178] sm:$0xff]
    %v60 = vld [vmem:[%s0 + $0x180] sm:$0xff]
    %v61 = vld [vmem:[%s0 + $0x188] sm:$0xff]
    %v62 = vld [vmem:[%s0 + $0x190] sm:$0xff]
    %v63 = vld [vmem:[%s0 + $0x198] sm:$0xff]
    %v64 = vld [vmem:[%s0 + $0x1a0] sm:$0xff]
    %v65 = vld [vmem:[%s0 + $0x1a8] sm:$0xff]
    %v66 = vld [vmem:[%s0 + $0x1b0] sm:$0xff]
    %v67 = vld [vmem:[%s0 + $0x1b8] sm:$0xff]
    %v68 = vld [vmem:[%s0 + $0x1c0] sm:$0xff]
    %v69 = vld [vmem:[%s0 + $0x1c8] sm:$0xff]
    %v70 = vld [vmem:[%s0 + $0x1d0] sm:$0xff]
    %v71 = vld [vmem:[%s0 + $0x1d8] sm:$0xff]
    %v72 = vld [vmem:[%s0 + $0x1e0] sm:$0xff]
    %v73 = vld [vmem:[%s0 + $0x1e8] sm:$0xff]
    %v74 = vld [vmem:[%s0 + $0x1f0] sm:$0xff]
    %v75 = vld [vmem:[%s0 + $0x1f8] sm:$0xff]
    %v76 = vld [vmem:[%s1] sm:$0xff]
    %v77 = vld [vmem:[%s1 + $0x8] sm:$0xff]
    %v78 = vld [vmem:[%s1 + $0x10] sm:$0xff]
    %v79 = vld [vmem:[%s1 + $0x18] sm:$0xff]
    %v80 = vld [vmem:[%s1 + $0x20] sm:$0xff]
    %v81 = vld [vmem:[%s1 + $0x28] sm:$0xff]
    %v82 = vld [vmem:[%s1 + $0x30] sm:$0xff]
    %v83 = vld [vmem:[%s1 + $0x38] sm:$0xff]
    %vm84 = vcmask 523264
    %v86 = vsel %vm84, %v12, 0
    %v89 = vsel %vm84, %v13, 0
    %v92 = vsel %vm84, %v14, 0
    %v95 = vsel %vm84, %v15, 0
    %v98 = vsel %vm84, %v16, 0
    %v101 = vsel %vm84, %v17, 0
    %v104 = vsel %vm84, %v18, 0
    %v107 = vsel %vm84, %v19, 0
    %v110 = vsel %vm84, %v20, 0
    %v113 = vsel %vm84, %v21, 0
    %v116 = vsel %vm84, %v22, 0
    %v119 = vsel %vm84, %v23, 0
    %v122 = vsel %vm84, %v24, 0
    %v125 = vsel %vm84, %v25, 0
    %v128 = vsel %vm84, %v26, 0
    %v131 = vsel %vm84, %v27, 0
    %v134 = vsel %vm84, %v28, 0
    %v137 = vsel %vm84, %v29, 0
    %v140 = vsel %vm84, %v30, 0
    %v143 = vsel %vm84, %v31, 0
    %v146 = vsel %vm84, %v32, 0
    %v149 = vsel %vm84, %v33, 0
    %v152 = vsel %vm84, %v34, 0
    %v155 = vsel %vm84, %v35, 0
    %v158 = vsel %vm84, %v36, 0
    %v161 = vsel %vm84, %v37, 0
    %v164 = vsel %vm84, %v38, 0
    %v167 = vsel %vm84, %v39, 0
    %v170 = vsel %vm84, %v40, 0
    %v173 = vsel %vm84, %v41, 0
    %v176 = vsel %vm84, %v42, 0
    %v179 = vsel %vm84, %v43, 0
    %v182 = vsel %vm84, %v44, 0
    %v185 = vsel %vm84, %v45, 0
    %v188 = vsel %vm84, %v46, 0
    %v191 = vsel %vm84, %v47, 0
    %v194 = vsel %vm84, %v48, 0
    %v197 = vsel %vm84, %v49, 0
    %v200 = vsel %vm84, %v50, 0
    %v203 = vsel %vm84, %v51, 0
    %v206 = vsel %vm84, %v52, 0
    %v209 = vsel %vm84, %v53, 0
    %v212 = vsel %vm84, %v54, 0
    %v215 = vsel %vm84, %v55, 0
    %v218 = vsel %vm84, %v56, 0
    %v221 = vsel %vm84, %v57, 0
    %v224 = vsel %vm84, %v58, 0
    %v227 = vsel %vm84, %v59, 0
    %v230 = vsel %vm84, %v60, 0
    %v233 = vsel %vm84, %v61, 0
    %v236 = vsel %vm84, %v62, 0
    %v239 = vsel %vm84, %v63, 0
    %v242 = vsel %vm84, %v64, 0
    %v245 = vsel %vm84, %v65, 0
    %v248 = vsel %vm84, %v66, 0
    %v251 = vsel %vm84, %v67, 0
    %v254 = vsel %vm84, %v68, 0
    %v257 = vsel %vm84, %v69, 0
    %v260 = vsel %vm84, %v70, 0
    %v263 = vsel %vm84, %v71, 0
    %v266 = vsel %vm84, %v72, 0
    %v269 = vsel %vm84, %v73, 0
    %v272 = vsel %vm84, %v74, 0
    %v275 = vsel %vm84, %v75, 0
    %277 = vmatprep.subr.mxu0 0.0
    %278 = vmatpush1.msra.mxu0 %v76
    %279 = vmatprep.subr.mxu0 0.0
    %280 = vmatpush1.msra.mxu0 %v77
    %281 = vmatprep.subr.mxu0 0.0
    %282 = vmatpush1.msra.mxu0 %v78
    %283 = vmatprep.subr.mxu0 0.0
    %284 = vmatpush1.msra.mxu0 %v79
    %285 = vmatprep.subr.mxu0 0.0
    %286 = vmatpush1.msra.mxu0 %v80
    %287 = vmatprep.subr.mxu0 0.0
    %288 = vmatpush1.msra.mxu0 %v81
    %289 = vmatprep.subr.mxu0 0.0
    %290 = vmatpush1.msra.mxu0 %v82
    %291 = vmatprep.subr.mxu0 0.0
    %292 = vmatpush1.msra.mxu0 %v83
    %293 = vmatprep.subr.mxu0 0.0
    %294 = vmatpush1.msra.mxu0 0.0
    %295 = vmatprep.subr.mxu0 0.0
    %296 = vmatpush1.msra.mxu0 0.0
    %297 = vmatprep.subr.mxu0 0.0
    %298 = vmatpush1.msra.mxu0 0.0
    %299 = vmatprep.subr.mxu0 0.0
    %300 = vmatpush1.msra.mxu0 0.0
    %301 = vmatprep.subr.mxu0 0.0
    %302 = vmatpush1.msra.mxu0 0.0
    %303 = vmatprep.subr.mxu0 0.0
    %304 = vmatpush1.msra.mxu0 0.0
    %305 = vmatprep.subr.mxu0 0.0
    %306 = vmatpush1.msra.mxu0 0.0
    %307 = vmatprep.subr.mxu0 0.0
    %308 = vmatpush1.msra.mxu0 0.0
    %309 = vmatprep.subr.mxu0 0.0
    %310 = vmatpush1.msra.mxu0 0.0
    %311 = vmatprep.subr.mxu0 0.0
    %312 = vmatpush1.msra.mxu0 0.0
    %313 = vmatprep.subr.mxu0 0.0
    %314 = vmatpush1.msra.mxu0 0.0
    %315 = vmatprep.subr.mxu0 0.0
    %316 = vmatpush1.msra.mxu0 0.0
    %317 = vmatprep.subr.mxu0 0.0
    %318 = vmatpush1.msra.mxu0 0.0
    %319 = vmatprep.subr.mxu0 0.0
    %320 = vmatpush1.msra.mxu0 0.0
    %321 = vmatprep.subr.mxu0 0.0
    %322 = vmatpush1.msra.mxu0 0.0
    %323 = vmatprep.subr.mxu0 0.0
    %324 = vmatpush1.msra.mxu0 0.0
    %325 = vmatprep.subr.mxu0 0.0
    %326 = vmatpush1.msra.mxu0 0.0
    %327 = vmatprep.subr.mxu0 0.0
    %328 = vmatpush1.msra.mxu0 0.0
    %329 = vmatprep.subr.mxu0 0.0
    %330 = vmatpush1.msra.mxu0 0.0
    %331 = vmatprep.subr.mxu0 0.0
    %332 = vmatpush1.msra.mxu0 0.0
    %333 = vmatprep.subr.mxu0 0.0
    %334 = vmatpush1.msra.mxu0 0.0
    %335 = vmatprep.subr.mxu0 0.0
    %336 = vmatpush1.msra.mxu0 0.0
    %337 = vmatprep.subr.mxu0 0.0
    %338 = vmatpush1.msra.mxu0 0.0
    %339 = vmatprep.subr.mxu0 0.0
    %340 = vmatpush1.msra.mxu0 0.0
    %341 = vmatprep.mubr.f32.mxu0 0.0
    %342 = vmatmul.mubr.f32.gmra.mrb[0].mxu0 %v86
    %v343 = vpop.f32.mrb[0].mxu0
    %v344 = vadd.f32 0.0, %v343
    %v345 = vpop.f32.mrb[0].mxu0
    %346 = vmatprep.mubr.f32.mxu0 0.0
    %347 = vmatmul.mubr.f32.gmra.mrb[0].mxu0 %v89
    %v348 = vpop.f32.mrb[0].mxu0
    %v349 = vadd.f32 0.0, %v348
    %v350 = vpop.f32.mrb[0].mxu0
    %351 = vmatprep.mubr.f32.mxu0 0.0
    %352 = vmatmul.mubr.f32.gmra.mrb[0].mxu0 %v92
    %v353 = vpop.f32.mrb[0].mxu0
    %v354 = vadd.f32 0.0, %v353
    %v355 = vpop.f32.mrb[0].mxu0
    %356 = vmatprep.mubr.f32.mxu0 0.0
    %357 = vmatmul.mubr.f32.gmra.mrb[0].mxu0 %v95
    %v358 = vpop.f32.mrb[0].mxu0
    %v359 = vadd.f32 0.0, %v358
    %v360 = vpop.f32.mrb[0].mxu0
    %361 = vmatprep.mubr.f32.mxu0 0.0
    %362 = vmatmul.mubr.f32.gmra.mrb[0].mxu0 %v98
    %v363 = vpop.f32.mrb[0].mxu0
    %v364 = vadd.f32 0.0, %v363
    %v365 = vpop.f32.mrb[0].mxu0
    %366 = vmatprep.mubr.f32.mxu0 0.0
    %367 = vmatmul.mubr.f32.gmra.mrb[0].mxu0 %v101
    %v368 = vpop.f32.mrb[0].mxu0
    %v369 = vadd.f32 0.0, %v368
    %v370 = vpop.f32.mrb[0].mxu0
    %371 = vmatprep.mubr.f32.mxu0 0.0
    %372 = vmatmul.mubr.f32.gmra.mrb[0].mxu0 %v104
    %v373 = vpop.f32.mrb[0].mxu0
    %v374 = vadd.f32 0.0, %v373
    %v375 = vpop.f32.mrb[0].mxu0
    %376 = vmatprep.mubr.f32.mxu0 0.0
    %377 = vmatmul.mubr.f32.gmra.mrb[0].mxu0 %v107
    %v378 = vpop.f32.mrb[0].mxu0
    %v379 = vadd.f32 0.0, %v378
    %v380 = vpop.f32.mrb[0].mxu0
    %381 = vmatprep.mubr.f32.mxu0 0.0
    %382 = vmatmul.mubr.f32.gmra.mrb[0].mxu0 %v110
    %v383 = vpop.f32.mrb[0].mxu0
    %v384 = vadd.f32 0.0, %v383
    %v385 = vpop.f32.mrb[0].mxu0
    %386 = vmatprep.mubr.f32.mxu0 0.0
    %387 = vmatmul.mubr.f32.gmra.mrb[0].mxu0 %v113
    %v388 = vpop.f32.mrb[0].mxu0
    %v389 = vadd.f32 0.0, %v388
    %v390 = vpop.f32.mrb[0].mxu0
    %391 = vmatprep.mubr.f32.mxu0 0.0
    %392 = vmatmul.mubr.f32.gmra.mrb[0].mxu0 %v116
    %v393 = vpop.f32.mrb[0].mxu0
    %v394 = vadd.f32 0.0, %v393
    %v395 = vpop.f32.mrb[0].mxu0
    %396 = vmatprep.mubr.f32.mxu0 0.0
    %397 = vmatmul.mubr.f32.gmra.mrb[0].mxu0 %v119
    %v398 = vpop.f32.mrb[0].mxu0
    %v399 = vadd.f32 0.0, %v398
    %v400 = vpop.f32.mrb[0].mxu0
    %401 = vmatprep.mubr.f32.mxu0 0.0
    %402 = vmatmul.mubr.f32.gmra.mrb[0].mxu0 %v122
    %v403 = vpop.f32.mrb[0].mxu0
    %v404 = vadd.f32 0.0, %v403
    %v405 = vpop.f32.mrb[0].mxu0
    %406 = vmatprep.mubr.f32.mxu0 0.0
    %407 = vmatmul.mubr.f32.gmra.mrb[0].mxu0 %v125
    %v408 = vpop.f32.mrb[0].mxu0
    %v409 = vadd.f32 0.0, %v408
    %v410 = vpop.f32.mrb[0].mxu0
    %411 = vmatprep.mubr.f32.mxu0 0.0
    %412 = vmatmul.mubr.f32.gmra.mrb[0].mxu0 %v128
    %v413 = vpop.f32.mrb[0].mxu0
    %v414 = vadd.f32 0.0, %v413
    %v415 = vpop.f32.mrb[0].mxu0
    %416 = vmatprep.mubr.f32.mxu0 0.0
    %417 = vmatmul.mubr.f32.gmra.mrb[0].mxu0 %v131
    %v418 = vpop.f32.mrb[0].mxu0
    %v419 = vadd.f32 0.0, %v418
    %v420 = vpop.f32.mrb[0].mxu0
    %421 = vmatprep.mubr.f32.mxu0 0.0
    %422 = vmatmul.mubr.f32.gmra.mrb[0].mxu0 %v134
    %v423 = vpop.f32.mrb[0].mxu0
    %v424 = vadd.f32 0.0, %v423
    %v425 = vpop.f32.mrb[0].mxu0
    %426 = vmatprep.mubr.f32.mxu0 0.0
    %427 = vmatmul.mubr.f32.gmra.mrb[0].mxu0 %v137
    %v428 = vpop.f32.mrb[0].mxu0
    %v429 = vadd.f32 0.0, %v428
    %v430 = vpop.f32.mrb[0].mxu0
    %431 = vmatprep.mubr.f32.mxu0 0.0
    %432 = vmatmul.mubr.f32.gmra.mrb[0].mxu0 %v140
    %v433 = vpop.f32.mrb[0].mxu0
    %v434 = vadd.f32 0.0, %v433
    %v435 = vpop.f32.mrb[0].mxu0
    %436 = vmatprep.mubr.f32.mxu0 0.0
    %437 = vmatmul.mubr.f32.gmra.mrb[0].mxu0 %v143
    %v438 = vpop.f32.mrb[0].mxu0
    %v439 = vadd.f32 0.0, %v438
    %v440 = vpop.f32.mrb[0].mxu0
    %441 = vmatprep.mubr.f32.mxu0 0.0
    %442 = vmatmul.mubr.f32.gmra.mrb[0].mxu0 %v146
    %v443 = vpop.f32.mrb[0].mxu0
    %v444 = vadd.f32 0.0, %v443
    %v445 = vpop.f32.mrb[0].mxu0
    %446 = vmatprep.mubr.f32.mxu0 0.0
    %447 = vmatmul.mubr.f32.gmra.mrb[0].mxu0 %v149
    %v448 = vpop.f32.mrb[0].mxu0
    %v449 = vadd.f32 0.0, %v448
    %v450 = vpop.f32.mrb[0].mxu0
    %451 = vmatprep.mubr.f32.mxu0 0.0
    %452 = vmatmul.mubr.f32.gmra.mrb[0].mxu0 %v152
    %v453 = vpop.f32.mrb[0].mxu0
    %v454 = vadd.f32 0.0, %v453
    %v455 = vpop.f32.mrb[0].mxu0
    %456 = vmatprep.mubr.f32.mxu0 0.0
    %457 = vmatmul.mubr.f32.gmra.mrb[0].mxu0 %v155
    %v458 = vpop.f32.mrb[0].mxu0
    %v459 = vadd.f32 0.0, %v458
    %v460 = vpop.f32.mrb[0].mxu0
    %461 = vmatprep.mubr.f32.mxu0 0.0
    %462 = vmatmul.mubr.f32.gmra.mrb[0].mxu0 %v158
    %v463 = vpop.f32.mrb[0].mxu0
    %v464 = vadd.f32 0.0, %v463
    %v465 = vpop.f32.mrb[0].mxu0
    %466 = vmatprep.mubr.f32.mxu0 0.0
    %467 = vmatmul.mubr.f32.gmra.mrb[0].mxu0 %v161
    %v468 = vpop.f32.mrb[0].mxu0
    %v469 = vadd.f32 0.0, %v468
    %v470 = vpop.f32.mrb[0].mxu0
    %471 = vmatprep.mubr.f32.mxu0 0.0
    %472 = vmatmul.mubr.f32.gmra.mrb[0].mxu0 %v164
    %v473 = vpop.f32.mrb[0].mxu0
    %v474 = vadd.f32 0.0, %v473
    %v475 = vpop.f32.mrb[0].mxu0
    %476 = vmatprep.mubr.f32.mxu0 0.0
    %477 = vmatmul.mubr.f32.gmra.mrb[0].mxu0 %v167
    %v478 = vpop.f32.mrb[0].mxu0
    %v479 = vadd.f32 0.0, %v478
    %v480 = vpop.f32.mrb[0].mxu0
    %481 = vmatprep.mubr.f32.mxu0 0.0
    %482 = vmatmul.mubr.f32.gmra.mrb[0].mxu0 %v170
    %v483 = vpop.f32.mrb[0].mxu0
    %v484 = vadd.f32 0.0, %v483
    %v485 = vpop.f32.mrb[0].mxu0
    %486 = vmatprep.mubr.f32.mxu0 0.0
    %487 = vmatmul.mubr.f32.gmra.mrb[0].mxu0 %v173
    %v488 = vpop.f32.mrb[0].mxu0
    %v489 = vadd.f32 0.0, %v488
    %v490 = vpop.f32.mrb[0].mxu0
    %491 = vmatprep.mubr.f32.mxu0 0.0
    %492 = vmatmul.mubr.f32.gmra.mrb[0].mxu0 %v176
    %v493 = vpop.f32.mrb[0].mxu0
    %v494 = vadd.f32 0.0, %v493
    %v495 = vpop.f32.mrb[0].mxu0
    %496 = vmatprep.mubr.f32.mxu0 0.0
    %497 = vmatmul.mubr.f32.gmra.mrb[0].mxu0 %v179
    %v498 = vpop.f32.mrb[0].mxu0
    %v499 = vadd.f32 0.0, %v498
    %v500 = vpop.f32.mrb[0].mxu0
    %501 = vmatprep.mubr.f32.mxu0 0.0
    %502 = vmatmul.mubr.f32.gmra.mrb[0].mxu0 %v182
    %v503 = vpop.f32.mrb[0].mxu0
    %v504 = vadd.f32 0.0, %v503
    %v505 = vpop.f32.mrb[0].mxu0
    %506 = vmatprep.mubr.f32.mxu0 0.0
    %507 = vmatmul.mubr.f32.gmra.mrb[0].mxu0 %v185
    %v508 = vpop.f32.mrb[0].mxu0
    %v509 = vadd.f32 0.0, %v508
    %v510 = vpop.f32.mrb[0].mxu0
    %511 = vmatprep.mubr.f32.mxu0 0.0
    %512 = vmatmul.mubr.f32.gmra.mrb[0].mxu0 %v188
    %v513 = vpop.f32.mrb[0].mxu0
    %v514 = vadd.f32 0.0, %v513
    %v515 = vpop.f32.mrb[0].mxu0
    %516 = vmatprep.mubr.f32.mxu0 0.0
    %517 = vmatmul.mubr.f32.gmra.mrb[0].mxu0 %v191
    %v518 = vpop.f32.mrb[0].mxu0
    %v519 = vadd.f32 0.0, %v518
    %v520 = vpop.f32.mrb[0].mxu0
    %521 = vmatprep.mubr.f32.mxu0 0.0
    %522 = vmatmul.mubr.f32.gmra.mrb[0].mxu0 %v194
    %v523 = vpop.f32.mrb[0].mxu0
    %v524 = vadd.f32 0.0, %v523
    %v525 = vpop.f32.mrb[0].mxu0
    %526 = vmatprep.mubr.f32.mxu0 0.0
    %527 = vmatmul.mubr.f32.gmra.mrb[0].mxu0 %v197
    %v528 = vpop.f32.mrb[0].mxu0
    %v529 = vadd.f32 0.0, %v528
    %v530 = vpop.f32.mrb[0].mxu0
    %531 = vmatprep.mubr.f32.mxu0 0.0
    %532 = vmatmul.mubr.f32.gmra.mrb[0].mxu0 %v200
    %v533 = vpop.f32.mrb[0].mxu0
    %v534 = vadd.f32 0.0, %v533
    %v535 = vpop.f32.mrb[0].mxu0
    %536 = vmatprep.mubr.f32.mxu0 0.0
    %537 = vmatmul.mubr.f32.gmra.mrb[0].mxu0 %v203
    %v538 = vpop.f32.mrb[0].mxu0
    %v539 = vadd.f32 0.0, %v538
    %v540 = vpop.f32.mrb[0].mxu0
    %541 = vmatprep.mubr.f32.mxu0 0.0
    %542 = vmatmul.mubr.f32.gmra.mrb[0].mxu0 %v206
    %v543 = vpop.f32.mrb[0].mxu0
    %v544 = vadd.f32 0.0, %v543
    %v545 = vpop.f32.mrb[0].mxu0
    %546 = vmatprep.mubr.f32.mxu0 0.0
    %547 = vmatmul.mubr.f32.gmra.mrb[0].mxu0 %v209
    %v548 = vpop.f32.mrb[0].mxu0
    %v549 = vadd.f32 0.0, %v548
    %v550 = vpop.f32.mrb[0].mxu0
    %551 = vmatprep.mubr.f32.mxu0 0.0
    %552 = vmatmul.mubr.f32.gmra.mrb[0].mxu0 %v212
    %v553 = vpop.f32.mrb[0].mxu0
    %v554 = vadd.f32 0.0, %v553
    %v555 = vpop.f32.mrb[0].mxu0
    %556 = vmatprep.mubr.f32.mxu0 0.0
    %557 = vmatmul.mubr.f32.gmra.mrb[0].mxu0 %v215
    %v558 = vpop.f32.mrb[0].mxu0
    %v559 = vadd.f32 0.0, %v558
    %v560 = vpop.f32.mrb[0].mxu0
    %561 = vmatprep.mubr.f32.mxu0 0.0
    %562 = vmatmul.mubr.f32.gmra.mrb[0].mxu0 %v218
    %v563 = vpop.f32.mrb[0].mxu0
    %v564 = vadd.f32 0.0, %v563
    %v565 = vpop.f32.mrb[0].mxu0
    %566 = vmatprep.mubr.f32.mxu0 0.0
    %567 = vmatmul.mubr.f32.gmra.mrb[0].mxu0 %v221
    %v568 = vpop.f32.mrb[0].mxu0
    %v569 = vadd.f32 0.0, %v568
    %v570 = vpop.f32.mrb[0].mxu0
    %571 = vmatprep.mubr.f32.mxu0 0.0
    %572 = vmatmul.mubr.f32.gmra.mrb[0].mxu0 %v224
    %v573 = vpop.f32.mrb[0].mxu0
    %v574 = vadd.f32 0.0, %v573
    %v575 = vpop.f32.mrb[0].mxu0
    %576 = vmatprep.mubr.f32.mxu0 0.0
    %577 = vmatmul.mubr.f32.gmra.mrb[0].mxu0 %v227
    %v578 = vpop.f32.mrb[0].mxu0
    %v579 = vadd.f32 0.0, %v578
    %v580 = vpop.f32.mrb[0].mxu0
    %581 = vmatprep.mubr.f32.mxu0 0.0
    %582 = vmatmul.mubr.f32.gmra.mrb[0].mxu0 %v230
    %v583 = vpop.f32.mrb[0].mxu0
    %v584 = vadd.f32 0.0, %v583
    %v585 = vpop.f32.mrb[0].mxu0
    %586 = vmatprep.mubr.f32.mxu0 0.0
    %587 = vmatmul.mubr.f32.gmra.mrb[0].mxu0 %v233
    %v588 = vpop.f32.mrb[0].mxu0
    %v589 = vadd.f32 0.0, %v588
    %v590 = vpop.f32.mrb[0].mxu0
    %591 = vmatprep.mubr.f32.mxu0 0.0
    %592 = vmatmul.mubr.f32.gmra.mrb[0].mxu0 %v236
    %v593 = vpop.f32.mrb[0].mxu0
    %v594 = vadd.f32 0.0, %v593
    %v595 = vpop.f32.mrb[0].mxu0
    %596 = vmatprep.mubr.f32.mxu0 0.0
    %597 = vmatmul.mubr.f32.gmra.mrb[0].mxu0 %v239
    %v598 = vpop.f32.mrb[0].mxu0
    %v599 = vadd.f32 0.0, %v598
    %v600 = vpop.f32.mrb[0].mxu0
    %601 = vmatprep.mubr.f32.mxu0 0.0
    %602 = vmatmul.mubr.f32.gmra.mrb[0].mxu0 %v242
    %v603 = vpop.f32.mrb[0].mxu0
    %v604 = vadd.f32 0.0, %v603
    %v605 = vpop.f32.mrb[0].mxu0
    %606 = vmatprep.mubr.f32.mxu0 0.0
    %607 = vmatmul.mubr.f32.gmra.mrb[0].mxu0 %v245
    %v608 = vpop.f32.mrb[0].mxu0
    %v609 = vadd.f32 0.0, %v608
    %v610 = vpop.f32.mrb[0].mxu0
    %611 = vmatprep.mubr.f32.mxu0 0.0
    %612 = vmatmul.mubr.f32.gmra.mrb[0].mxu0 %v248
    %v613 = vpop.f32.mrb[0].mxu0
    %v614 = vadd.f32 0.0, %v613
    %v615 = vpop.f32.mrb[0].mxu0
    %616 = vmatprep.mubr.f32.mxu0 0.0
    %617 = vmatmul.mubr.f32.gmra.mrb[0].mxu0 %v251
    %v618 = vpop.f32.mrb[0].mxu0
    %v619 = vadd.f32 0.0, %v618
    %v620 = vpop.f32.mrb[0].mxu0
    %621 = vmatprep.mubr.f32.mxu0 0.0
    %622 = vmatmul.mubr.f32.gmra.mrb[0].mxu0 %v254
    %v623 = vpop.f32.mrb[0].mxu0
    %v624 = vadd.f32 0.0, %v623
    %v625 = vpop.f32.mrb[0].mxu0
    %626 = vmatprep.mubr.f32.mxu0 0.0
    %627 = vmatmul.mubr.f32.gmra.mrb[0].mxu0 %v257
    %v628 = vpop.f32.mrb[0].mxu0
    %v629 = vadd.f32 0.0, %v628
    %v630 = vpop.f32.mrb[0].mxu0
    %631 = vmatprep.mubr.f32.mxu0 0.0
    %632 = vmatmul.mubr.f32.gmra.mrb[0].mxu0 %v260
    %v633 = vpop.f32.mrb[0].mxu0
    %v634 = vadd.f32 0.0, %v633
    %v635 = vpop.f32.mrb[0].mxu0
    %636 = vmatprep.mubr.f32.mxu0 0.0
    %637 = vmatmul.mubr.f32.gmra.mrb[0].mxu0 %v263
    %v638 = vpop.f32.mrb[0].mxu0
    %v639 = vadd.f32 0.0, %v638
    %v640 = vpop.f32.mrb[0].mxu0
    %641 = vmatprep.mubr.f32.mxu0 0.0
    %642 = vmatmul.mubr.f32.gmra.mrb[0].mxu0 %v266
    %v643 = vpop.f32.mrb[0].mxu0
    %v644 = vadd.f32 0.0, %v643
    %v645 = vpop.f32.mrb[0].mxu0
    %646 = vmatprep.mubr.f32.mxu0 0.0
    %647 = vmatmul.mubr.f32.gmra.mrb[0].mxu0 %v269
    %v648 = vpop.f32.mrb[0].mxu0
    %v649 = vadd.f32 0.0, %v648
    %v650 = vpop.f32.mrb[0].mxu0
    %651 = vmatprep.mubr.f32.mxu0 0.0
    %652 = vmatmul.mubr.f32.gmra.mrb[0].mxu0 %v272
    %v653 = vpop.f32.mrb[0].mxu0
    %v654 = vadd.f32 0.0, %v653
    %v655 = vpop.f32.mrb[0].mxu0
    %656 = vmatprep.mubr.f32.mxu0 0.0
    %657 = vmatmul.mubr.f32.gmra.mrb[0].mxu0 %v275
    %v658 = vpop.f32.mrb[0].mxu0
    %v659 = vadd.f32 0.0, %v658
    %v660 = vpop.f32.mrb[0].mxu0
    %661 = vdwg.mxu0
    %v662 = vpack.c.bf16 %v349, %v344
    %v663 = vpack.c.bf16 %v359, %v354
    %v664 = vpack.c.bf16 %v369, %v364
    %v665 = vpack.c.bf16 %v379, %v374
    %v666 = vpack.c.bf16 %v389, %v384
    %v667 = vpack.c.bf16 %v399, %v394
    %v668 = vpack.c.bf16 %v409, %v404
    %v669 = vpack.c.bf16 %v419, %v414
    %v670 = vpack.c.bf16 %v429, %v424
    %v671 = vpack.c.bf16 %v439, %v434
    %v672 = vpack.c.bf16 %v449, %v444
    %v673 = vpack.c.bf16 %v459, %v454
    %v674 = vpack.c.bf16 %v469, %v464
    %v675 = vpack.c.bf16 %v479, %v474
    %v676 = vpack.c.bf16 %v489, %v484
    %v677 = vpack.c.bf16 %v499, %v494
    %v678 = vpack.c.bf16 %v509, %v504
    %v679 = vpack.c.bf16 %v519, %v514
    %v680 = vpack.c.bf16 %v529, %v524
    %v681 = vpack.c.bf16 %v539, %v534
    %v682 = vpack.c.bf16 %v549, %v544
    %v683 = vpack.c.bf16 %v559, %v554
    %v684 = vpack.c.bf16 %v569, %v564
    %v685 = vpack.c.bf16 %v579, %v574
    %v686 = vpack.c.bf16 %v589, %v584
    %v687 = vpack.c.bf16 %v599, %v594
    %v688 = vpack.c.bf16 %v609, %v604
    %v689 = vpack.c.bf16 %v619, %v614
    %v690 = vpack.c.bf16 %v629, %v624
    %v691 = vpack.c.bf16 %v639, %v634
    %v692 = vpack.c.bf16 %v649, %v644
    %v693 = vpack.c.bf16 %v659, %v654
    %v726 = vunpack.c.l.b16 %v662
    %v727 = vunpack.c.h.b16 %v662
    %v728 = vunpack.c.l.b16 %v663
    %v729 = vunpack.c.h.b16 %v663
    %v730 = vunpack.c.l.b16 %v664
    %v731 = vunpack.c.h.b16 %v664
    %v732 = vunpack.c.l.b16 %v665
    %v733 = vunpack.c.h.b16 %v665
    %v734 = vunpack.c.l.b16 %v666
    %v735 = vunpack.c.h.b16 %v666
    %v736 = vunpack.c.l.b16 %v667
    %v737 = vunpack.c.h.b16 %v667
    %v738 = vunpack.c.l.b16 %v668
    %v739 = vunpack.c.h.b16 %v668
    %v740 = vunpack.c.l.b16 %v669
    %v741 = vunpack.c.h.b16 %v669
    %v742 = vunpack.c.l.b16 %v670
    %v743 = vunpack.c.h.b16 %v670
    %v744 = vunpack.c.l.b16 %v671
    %v745 = vunpack.c.h.b16 %v671
    %v746 = vunpack.c.l.b16 %v672
    %v747 = vunpack.c.h.b16 %v672
    %v748 = vunpack.c.l.b16 %v673
    %v749 = vunpack.c.h.b16 %v673
    %v750 = vunpack.c.l.b16 %v674
    %v751 = vunpack.c.h.b16 %v674
    %v752 = vunpack.c.l.b16 %v675
    %v753 = vunpack.c.h.b16 %v675
    %v754 = vunpack.c.l.b16 %v676
    %v755 = vunpack.c.h.b16 %v676
    %v756 = vunpack.c.l.b16 %v677
    %v757 = vunpack.c.h.b16 %v677
    %v758 = vunpack.c.l.b16 %v678
    %v759 = vunpack.c.h.b16 %v678
    %v760 = vunpack.c.l.b16 %v679
    %v761 = vunpack.c.h.b16 %v679
    %v762 = vunpack.c.l.b16 %v680
    %v763 = vunpack.c.h.b16 %v680
    %v764 = vunpack.c.l.b16 %v681
    %v765 = vunpack.c.h.b16 %v681
    %v766 = vunpack.c.l.b16 %v682
    %v767 = vunpack.c.h.b16 %v682
    %v768 = vunpack.c.l.b16 %v683
    %v769 = vunpack.c.h.b16 %v683
    %v770 = vunpack.c.l.b16 %v684
    %v771 = vunpack.c.h.b16 %v684
    %v772 = vunpack.c.l.b16 %v685
    %v773 = vunpack.c.h.b16 %v685
    %v774 = vunpack.c.l.b16 %v686
    %v775 = vunpack.c.h.b16 %v686
    %v776 = vunpack.c.l.b16 %v687
    %v777 = vunpack.c.h.b16 %v687
    %v778 = vunpack.c.l.b16 %v688
    %v779 = vunpack.c.h.b16 %v688
    %v780 = vunpack.c.l.b16 %v689
    %v781 = vunpack.c.h.b16 %v689
    %v782 = vunpack.c.l.b16 %v690
    %v783 = vunpack.c.h.b16 %v690
    %v784 = vunpack.c.l.b16 %v691
    %v785 = vunpack.c.h.b16 %v691
    %v786 = vunpack.c.l.b16 %v692
    %v787 = vunpack.c.h.b16 %v692
    %v788 = vunpack.c.l.b16 %v693
    %v789 = vunpack.c.h.b16 %v693
    %v790 = vpack.c.b16 %v726, %v726
    %v791 = vpack.c.b16 %v727, %v727
    %v792 = vpack.c.b16 %v728, %v728
    %v793 = vpack.c.b16 %v729, %v729
    %v794 = vpack.c.b16 %v730, %v730
    %v795 = vpack.c.b16 %v731, %v731
    %v796 = vpack.c.b16 %v732, %v732
    %v797 = vpack.c.b16 %v733, %v733
    %v798 = vpack.c.b16 %v734, %v734
    %v799 = vpack.c.b16 %v735, %v735
    %v800 = vpack.c.b16 %v736, %v736
    %v801 = vpack.c.b16 %v737, %v737
    %v802 = vpack.c.b16 %v738, %v738
    %v803 = vpack.c.b16 %v739, %v739
    %v804 = vpack.c.b16 %v740, %v740
    %v805 = vpack.c.b16 %v741, %v741
    %v806 = vpack.c.b16 %v742, %v742
    %v807 = vpack.c.b16 %v743, %v743
    %v808 = vpack.c.b16 %v744, %v744
    %v809 = vpack.c.b16 %v745, %v745
    %v810 = vpack.c.b16 %v746, %v746
    %v811 = vpack.c.b16 %v747, %v747
    %v812 = vpack.c.b16 %v748, %v748
    %v813 = vpack.c.b16 %v749, %v749
    %v814 = vpack.c.b16 %v750, %v750
    %v815 = vpack.c.b16 %v751, %v751
    %v816 = vpack.c.b16 %v752, %v752
    %v817 = vpack.c.b16 %v753, %v753
    %v818 = vpack.c.b16 %v754, %v754
    %v819 = vpack.c.b16 %v755, %v755
    %v820 = vpack.c.b16 %v756, %v756
    %v821 = vpack.c.b16 %v757, %v757
    %v822 = vpack.c.b16 %v758, %v758
    %v823 = vpack.c.b16 %v759, %v759
    %v824 = vpack.c.b16 %v760, %v760
    %v825 = vpack.c.b16 %v761, %v761
    %v826 = vpack.c.b16 %v762, %v762
    %v827 = vpack.c.b16 %v763, %v763
    %v828 = vpack.c.b16 %v764, %v764
    %v829 = vpack.c.b16 %v765, %v765
    %v830 = vpack.c.b16 %v766, %v766
    %v831 = vpack.c.b16 %v767, %v767
    %v832 = vpack.c.b16 %v768, %v768
    %v833 = vpack.c.b16 %v769, %v769
    %v834 = vpack.c.b16 %v770, %v770
    %v835 = vpack.c.b16 %v771, %v771
    %v836 = vpack.c.b16 %v772, %v772
    %v837 = vpack.c.b16 %v773, %v773
    %v838 = vpack.c.b16 %v774, %v774
    %v839 = vpack.c.b16 %v775, %v775
    %v840 = vpack.c.b16 %v776, %v776
    %v841 = vpack.c.b16 %v777, %v777
    %v842 = vpack.c.b16 %v778, %v778
    %v843 = vpack.c.b16 %v779, %v779
    %v844 = vpack.c.b16 %v780, %v780
    %v845 = vpack.c.b16 %v781, %v781
    %v846 = vpack.c.b16 %v782, %v782
    %v847 = vpack.c.b16 %v783, %v783
    %v848 = vpack.c.b16 %v784, %v784
    %v849 = vpack.c.b16 %v785, %v785
    %v850 = vpack.c.b16 %v786, %v786
    %v851 = vpack.c.b16 %v787, %v787
    %v852 = vpack.c.b16 %v788, %v788
    %v853 = vpack.c.b16 %v789, %v789
    %918 = vst [vmem:[#allocation2] sm:$0xf] %v790
    %919 = vst [vmem:[#allocation2 + $0x4] sm:$0xf] %v791
    %920 = vst [vmem:[#allocation2 + $0x8] sm:$0xf] %v792
    %921 = vst [vmem:[#allocation2 + $0xc] sm:$0xf] %v793
    %922 = vst [vmem:[#allocation2 + $0x10] sm:$0xf] %v794
    %923 = vst [vmem:[#allocation2 + $0x14] sm:$0xf] %v795
    %924 = vst [vmem:[#allocation2 + $0x18] sm:$0xf] %v796
    %925 = vst [vmem:[#allocation2 + $0x1c] sm:$0xf] %v797
    %926 = vst [vmem:[#allocation2 + $0x20] sm:$0xf] %v798
    %927 = vst [vmem:[#allocation2 + $0x24] sm:$0xf] %v799
    %928 = vst [vmem:[#allocation2 + $0x28] sm:$0xf] %v800
    %929 = vst [vmem:[#allocation2 + $0x2c] sm:$0xf] %v801
    %930 = vst [vmem:[#allocation2 + $0x30] sm:$0xf] %v802
    %931 = vst [vmem:[#allocation2 + $0x34] sm:$0xf] %v803
    %932 = vst [vmem:[#allocation2 + $0x38] sm:$0xf] %v804
    %933 = vst [vmem:[#allocation2 + $0x3c] sm:$0xf] %v805
    %934 = vst [vmem:[#allocation2 + $0x40] sm:$0xf] %v806
    %935 = vst [vmem:[#allocation2 + $0x44] sm:$0xf] %v807
    %936 = vst [vmem:[#allocation2 + $0x48] sm:$0xf] %v808
    %937 = vst [vmem:[#allocation2 + $0x4c] sm:$0xf] %v809
    %938 = vst [vmem:[#allocation2 + $0x50] sm:$0xf] %v810
    %939 = vst [vmem:[#allocation2 + $0x54] sm:$0xf] %v811
    %940 = vst [vmem:[#allocation2 + $0x58] sm:$0xf] %v812
    %941 = vst [vmem:[#allocation2 + $0x5c] sm:$0xf] %v813
    %942 = vst [vmem:[#allocation2 + $0x60] sm:$0xf] %v814
    %943 = vst [vmem:[#allocation2 + $0x64] sm:$0xf] %v815
    %944 = vst [vmem:[#allocation2 + $0x68] sm:$0xf] %v816
    %945 = vst [vmem:[#allocation2 + $0x6c] sm:$0xf] %v817
    %946 = vst [vmem:[#allocation2 + $0x70] sm:$0xf] %v818
    %947 = vst [vmem:[#allocation2 + $0x74] sm:$0xf] %v819
    %948 = vst [vmem:[#allocation2 + $0x78] sm:$0xf] %v820
    %949 = vst [vmem:[#allocation2 + $0x7c] sm:$0xf] %v821
    %950 = vst [vmem:[#allocation2 + $0x80] sm:$0xf] %v822
    %951 = vst [vmem:[#allocation2 + $0x84] sm:$0xf] %v823
    %952 = vst [vmem:[#allocation2 + $0x88] sm:$0xf] %v824
    %953 = vst [vmem:[#allocation2 + $0x8c] sm:$0xf] %v825
    %954 = vst [vmem:[#allocation2 + $0x90] sm:$0xf] %v826
    %955 = vst [vmem:[#allocation2 + $0x94] sm:$0xf] %v827
    %956 = vst [vmem:[#allocation2 + $0x98] sm:$0xf] %v828
    %957 = vst [vmem:[#allocation2 + $0x9c] sm:$0xf] %v829
    %958 = vst [vmem:[#allocation2 + $0xa0] sm:$0xf] %v830
    %959 = vst [vmem:[#allocation2 + $0xa4] sm:$0xf] %v831
    %960 = vst [vmem:[#allocation2 + $0xa8] sm:$0xf] %v832
    %961 = vst [vmem:[#allocation2 + $0xac] sm:$0xf] %v833
    %962 = vst [vmem:[#allocation2 + $0xb0] sm:$0xf] %v834
    %963 = vst [vmem:[#allocation2 + $0xb4] sm:$0xf] %v835
    %964 = vst [vmem:[#allocation2 + $0xb8] sm:$0xf] %v836
    %965 = vst [vmem:[#allocation2 + $0xbc] sm:$0xf] %v837
    %966 = vst [vmem:[#allocation2 + $0xc0] sm:$0xf] %v838
    %967 = vst [vmem:[#allocation2 + $0xc4] sm:$0xf] %v839
    %968 = vst [vmem:[#allocation2 + $0xc8] sm:$0xf] %v840
    %969 = vst [vmem:[#allocation2 + $0xcc] sm:$0xf] %v841
    %970 = vst [vmem:[#allocation2 + $0xd0] sm:$0xf] %v842
    %971 = vst [vmem:[#allocation2 + $0xd4] sm:$0xf] %v843
    %972 = vst [vmem:[#allocation2 + $0xd8] sm:$0xf] %v844
    %973 = vst [vmem:[#allocation2 + $0xdc] sm:$0xf] %v845
    %974 = vst [vmem:[#allocation2 + $0xe0] sm:$0xf] %v846
    %975 = vst [vmem:[#allocation2 + $0xe4] sm:$0xf] %v847
    %976 = vst [vmem:[#allocation2 + $0xe8] sm:$0xf] %v848
    %977 = vst [vmem:[#allocation2 + $0xec] sm:$0xf] %v849
    %978 = vst [vmem:[#allocation2 + $0xf0] sm:$0xf] %v850
    %979 = vst [vmem:[#allocation2 + $0xf4] sm:$0xf] %v851
    %980 = vst [vmem:[#allocation2 + $0xf8] sm:$0xf] %v852
    %981 = vst [vmem:[#allocation2 + $0xfc] sm:$0xf] %v853
    // Predicated region
    $region10: #{tpu_custom_call.1} parent=1 // pred_check
      _
    $region11: #{tpu_custom_call.1} parent=1 // pred_check_branch
      %983 = sbr.rel (0) target = $region13
    $region12: #{tpu_custom_call.1} parent=1 // pred_region
      %s985 = ssub.s32 4096, 4096
      %986 = vsyncadd [#allocation3], %s985
      %s987 = sshll.u32 [#allocation2], 4
      %s988 = int_to_ptr.vmem [resolvable:$true] %s987
      %993 = dma.vmem_to_hbm [thread:$0]  %s988, 4096, %s2, [#allocation3], 64, 64, 4
    $region13: #{tpu_custom_call.1} parent=1 // pred_fallthru
      _
    // Predicated region
    $region14: #{tpu_custom_call.1} parent=1 // pred_check
      _
    $region15: #{tpu_custom_call.1} parent=1 // pred_check_branch
      %995 = sbr.rel (0) target = $region17
    $region16: #{tpu_custom_call.1} parent=1 // pred_region
      %996 = dma.done [#allocation3], 4096
    $region17: #{tpu_custom_call.1} parent=1 // pred_fallthru
      _
    %997 = vsyncpa [#allocation3], 1

</llo_original>
